<compile_context>
chip_gen: v7x
topology: tpu7x:2x2x1
jax: 0.10.0
libtpu: 0.0.40
codegen_flags: <defaults>
</compile_context>

<pallas_src>
import jax
import jax.numpy as jnp
from jax.experimental import pallas as pl
from jax.experimental.pallas import tpu as pltpu

_LANES = 128
_SUBLANES = 8


def _bcast_fill_kernel(row_ref, out_ref):
    # row_ref: (1, C) VMEM, the per-lane scale pattern (constant across grid steps).
    # out_ref: (TR, C) VMEM tile. Body is a pure sublane-broadcast fill (store-bound).
    out_ref[...] = jnp.broadcast_to(row_ref[...], out_ref.shape)


def _round_up(x, m):
    return (x + m - 1) // m * m


def _fill_rows(row, n_rows, dtype):
    """Materialize broadcast_to(row, (n_rows_padded, C)) with a tiled Pallas fill."""
    C = row.shape[-1]
    tr = min(1024, _round_up(n_rows, _SUBLANES))      # tile rows (multiple of 8 sublanes)
    rows_padded = _round_up(n_rows, tr)
    grid = (rows_padded // tr,)
    return pl.pallas_call(
        _bcast_fill_kernel,
        out_shape=jax.ShapeDtypeStruct((rows_padded, C), dtype),
        grid=grid,
        in_specs=[pl.BlockSpec((1, C), lambda i: (0, 0))],   # tiny pattern, same block every step
        out_specs=pl.BlockSpec((tr, C), lambda i: (i, 0)),
        compiler_params=pltpu.CompilerParams(
            dimension_semantics=("parallel",)),               # split rows across TCs on v7x
    )(row.reshape(1, C).astype(dtype))


def gaussian_head_forward(mean, var_param):
    """Return (loc, scale) of Independent(Normal(mean, sqrt(softplus(var_param))), 1).

    loc is `mean` itself (no copy). scale is a materialized (B, A) float32 array
    (state-independent, broadcast over batch). Supports 'spherical' (var_param
    shape (1,)) and 'diagonal' (shape (A,)) parameterizations.
    """
    B, A = mean.shape
    loc = mean  # pure pass-through — no kernel, no HBM traffic.

    # Scalar/vector math hoisted out of the kernel (one-off, tiny): softplus + sqrt.
    scale_vec = jnp.sqrt(jax.nn.softplus(var_param.astype(jnp.float32)))  # (1,) or (A,)
    spherical = scale_vec.shape[0] == 1

    if spherical or (A <= _LANES and _LANES % A == 0):
        # Lane-dense path: view the flat (B*A,) scale as (rows, 128) so every store
        # is a full-lane vst. Since 128 % A == 0 (or scale is constant), the lane
        # pattern repeats identically on every row: pattern[c] == scale_vec[c % A].
        if spherical:
            pattern = jnp.broadcast_to(scale_vec, (_LANES,))
        else:
            pattern = jnp.tile(scale_vec, _LANES // A)
        total = B * A
        n_rows = pl.cdiv(total, _LANES)
        slab = _fill_rows(pattern, n_rows, jnp.float32)       # (rows_padded, 128)
        scale = slab.reshape(-1)[:total].reshape(B, A)
    else:
        # Fallback ('diagonal' with A not dividing 128): broadcast the (A,) row over
        # a batch-tiled grid. Last dim < 128 means masked stores, but stays correct.
        row = jnp.broadcast_to(scale_vec, (A,))
        slab = _fill_rows(row, B, jnp.float32)                # (B_padded, A)
        scale = slab[:B]

    # TODO(synk): sample()/log_prob of the Independent Normal (the distribution
    # object itself) is left to the caller; only its parameters are computed here.
    return loc, scale


if __name__ == "__main__":
    key = jax.random.PRNGKey(0)

    batch = 8
    action_size = 8

    # Example input: the mean produced by an upstream policy network.
    mean = jax.random.normal(key, (batch, action_size), dtype=jnp.float32)

    # --- spherical (module default): var_param = nn.Parameter(zeros(1)) ---
    var_sph = jnp.zeros((1,), dtype=jnp.float32)
    loc, scale = gaussian_head_forward(mean, var_sph)
    jax.block_until_ready((loc, scale))

    ref_scale = jnp.broadcast_to(jnp.sqrt(jax.nn.softplus(var_sph)), mean.shape)
    assert loc.shape == mean.shape and scale.shape == mean.shape
    assert jnp.array_equal(loc, mean)
    assert jnp.allclose(scale, ref_scale, atol=1e-6, rtol=1e-6)

    # --- diagonal variant: var_param has shape (action_size,) ---
    var_diag = jnp.linspace(-1.0, 1.0, action_size, dtype=jnp.float32)
    loc_d, scale_d = gaussian_head_forward(mean, var_diag)
    jax.block_until_ready((loc_d, scale_d))

    ref_scale_d = jnp.broadcast_to(
        jnp.sqrt(jax.nn.softplus(var_diag))[None, :], mean.shape)
    assert jnp.array_equal(loc_d, mean)
    assert jnp.allclose(scale_d, ref_scale_d, atol=1e-6, rtol=1e-6)

    print("KERNEL_OK")
</pallas_src>

<mosaic_0001>
module attributes {stable_mosaic.version = 11 : i64} {
  func.func @_bcast_fill_kernel(%arg0: i32, %arg1: memref<1x128xf32, #tpu.memory_space<vmem>>, %arg2: memref<8x128xf32, #tpu.memory_space<vmem>>) attributes {dimension_semantics = [#tpu.dimension_semantics<parallel>], iteration_bounds = array<i64: 1>, scalar_prefetch = 0 : i64, scratch_operands = 0 : i64, tpu.core_type = #tpu.core_type<tc>, window_params = [{pipeline_mode = #tpu.pipeline_mode<synchronous>, transform_indices = @transform_0, window_bounds = array<i64: 1, 128>}, {transform_indices = @transform_1, window_bounds = array<i64: 8, 128>}]} {
    %c0 = arith.constant 0 : index
    %c0_0 = arith.constant 0 : index
    %0 = vector.load %arg1[%c0, %c0_0] : memref<1x128xf32, #tpu.memory_space<vmem>>, vector<1x128xf32>
    %1 = vector.shape_cast %0 : vector<1x128xf32> to vector<1x128xf32>
    %2 = vector.broadcast %1 : vector<1x128xf32> to vector<8x128xf32>
    %c0_1 = arith.constant 0 : index
    %c0_2 = arith.constant 0 : index
    %3 = vector.load %arg2[%c0_1, %c0_2] : memref<8x128xf32, #tpu.memory_space<vmem>>, vector<8x128xf32>
    tpu.vector_store %arg2[%c0_1, %c0_2], %2 {strides = array<i32>} : memref<8x128xf32, #tpu.memory_space<vmem>>, vector<8x128xf32>,
    return
  }
  func.func @transform_0(%arg0: i32) -> (i32, i32) {
    %c0_i32 = arith.constant 0 : i32
    %c0_i32_0 = arith.constant 0 : i32
    %c0_i32_1 = arith.constant 0 : i32
    return %c0_i32, %c0_i32_0 : i32, i32
  }
  func.func @transform_1(%arg0: i32) -> (i32, i32) {
    %c0_i32 = arith.constant 0 : i32
    %c0_i32_0 = arith.constant 0 : i32
    return %arg0, %c0_i32 : i32, i32
  }
}

</mosaic_0001>

<llo_original>
// kernel: tpu_custom_call.1
$region0: #{tpu_custom_call.1}
  #allocation0 [shape = 'u32[]', space=smem, size = 0x4, offset = 0x4, fixed_abs, tag = 'smem constant byte address 0x4 - core index']
  #allocation1 [shape = 'u32[144,128]{1,0:T(1,128)}', space=vmem, size = 0x12000, scoped, tag = 'internal scratch']
  %s0 = inlined_call_operand.hbm [shape: f32[1,128], index: 0, kind: input, shape index: {}]
  %s1 = inlined_call_operand.hbm [shape: f32[8,128], index: 1, kind: output, shape index: {}]
  %s2 = sld [smem:[#allocation0]]
  $region18: #{tpu_custom_call.1} parent=0
    _
  %s4 = ssub.s32 1, %s2
  %s5 = scalar_select 0, %s4, %s2
  $region1: #{tpu_custom_call.1} parent=0
    #allocation2 [shape = 'u8[512]{0}', space=vmem, size = 0x400, scoped, tag = 'input window, operand 0, single buffered']
    #allocation3 [shape = 's32[1]{0}', space=sflag, size = 0x4, scoped, tag = 'scoped memory for tpu_custom_call.1']
    #allocation4 [shape = 's32[1]{0}', space=sflag, size = 0x4, scoped, tag = 'scoped memory for tpu_custom_call.1']
    #allocation5 [shape = 'u8[4096]{0}', space=vmem, size = 0x1000, scoped, tag = 'output window, operand 0, single buffered']
    %6 = vsyncpa [#allocation3], 0
    %7 = vsyncpa [#allocation4], 0
    // Predicated region
    $region2: #{tpu_custom_call.1} parent=1 // pred_check
      _
    $region3: #{tpu_custom_call.1} parent=1 // pred_check_branch
      %9 = sbr.rel (0) target = $region5
    $region4: #{tpu_custom_call.1} parent=1 // pred_region
      %s11 = ssub.s32 16, 16
      %12 = vsyncadd [#allocation3], %s11
      %s14 = sshll.u32 [#allocation2], 4
      %s15 = int_to_ptr.vmem [resolvable:$true] %s14
      %17 = dma.hbm_to_vmem [thread:$0]  %s0, 16, %s15, [#allocation3]
    $region5: #{tpu_custom_call.1} parent=1 // pred_fallthru
      _
    // Predicated region
    $region6: #{tpu_custom_call.1} parent=1 // pred_check
      _
    $region7: #{tpu_custom_call.1} parent=1 // pred_check_branch
      %19 = sbr.rel (0) target = $region9
    $region8: #{tpu_custom_call.1} parent=1 // pred_region
      %20 = dma.done [#allocation3], 16
    $region9: #{tpu_custom_call.1} parent=1 // pred_fallthru
      _
    %v21 = vld [vmem:[#allocation2] sm:$0x1]
    %v23 = vlaneseq
    %v24 = vshrl.u32 %v23, 7
    %v25 = vsub.s32 0, %v24
    %v26 = vrot.slane %v21, %v25
    %28 = vst [vmem:[#allocation5] sm:$0xff] %v26
    // Predicated region
    $region10: #{tpu_custom_call.1} parent=1 // pred_check
      _
    $region11: #{tpu_custom_call.1} parent=1 // pred_check_branch
      %30 = sbr.rel (0) target = $region13
    $region12: #{tpu_custom_call.1} parent=1 // pred_region
      %s32 = ssub.s32 128, 128
      %33 = vsyncadd [#allocation4], %s32
      %s35 = sshll.u32 [#allocation5], 4
      %s36 = int_to_ptr.vmem [resolvable:$true] %s35
      %38 = dma.vmem_to_hbm [thread:$0]  %s36, 128, %s1, [#allocation4]
    $region13: #{tpu_custom_call.1} parent=1 // pred_fallthru
      _
    // Predicated region
    $region14: #{tpu_custom_call.1} parent=1 // pred_check
      _
    $region15: #{tpu_custom_call.1} parent=1 // pred_check_branch
      %40 = sbr.rel (0) target = $region17
    $region16: #{tpu_custom_call.1} parent=1 // pred_region
      %41 = dma.done [#allocation4], 128
    $region17: #{tpu_custom_call.1} parent=1 // pred_fallthru
      _
    %42 = vsyncpa [#allocation3], 1
    %43 = vsyncpa [#allocation4], 1

</llo_original>
